<compile_context>
chip_gen: v7x
topology: tpu7x:2x2x1
jax: 0.10.0
libtpu: 0.0.40
codegen_flags: <defaults>
</compile_context>

<pallas_src>
import math
import functools

import jax
import jax.numpy as jnp
from jax.experimental import pallas as pl
from jax.experimental.pallas import tpu as pltpu

PAD_IDX = 0


# ----------------------------------------------------------------------------
# Per-generation tiling / VMEM configuration
# ----------------------------------------------------------------------------

def _phys_vmem_bytes():
    try:
        return int(pltpu.get_tpu_info().vmem_capacity_bytes)
    except Exception:
        return 128 * 1024 * 1024   # v5e / v6e default


_PHYS_VMEM = _phys_vmem_bytes()
if _PHYS_VMEM <= 64 * 1024 * 1024:
    # v7x: 64 MiB physical VMEM per TC -> smaller K tiles, tighter scoped limit.
    TM_PREF, TN_PREF, TK_PREF = 256, 256, 256
    VMEM_LIMIT = 48 * 1024 * 1024
else:
    # v5e / v6e: 128 MiB VMEM -> big tiles, generous limit (v6e especially).
    TM_PREF, TN_PREF, TK_PREF = 256, 256, 512
    VMEM_LIMIT = 96 * 1024 * 1024


def _cparams(dimension_semantics):
    return pltpu.CompilerParams(dimension_semantics=dimension_semantics,
                                vmem_limit_bytes=VMEM_LIMIT)


def _pick_tile(dim, pref, align):
    """Largest legal tile <= pref for `dim`.

    Returns `dim` (full block, always legal) when dim <= pref; otherwise the
    largest `align`-multiple <= pref that divides dim.  Returns 0 if the caller
    must pad `dim` to a multiple of `pref` (never falls back to the full dim)."""
    if dim <= pref:
        return dim
    t = (pref // align) * align
    while t >= align:
        if dim % t == 0:
            return t
        t -= align
    return 0


def _pad_dim(a, axis, mult):
    pad = (-a.shape[axis]) % mult
    if pad:
        widths = [(0, 0)] * a.ndim
        widths[axis] = (0, pad)
        a = jnp.pad(a, widths)
    return a


# ----------------------------------------------------------------------------
# Pallas kernels
# ----------------------------------------------------------------------------

def _linear_kernel(x_ref, w_ref, b_ref, o_ref, acc_ref, *, activation):
    # x: (tm, tk) f32/bf16, w: (tk, tn) bf16 (pre-transposed), b: (1, tn) f32.
    @pl.when(pl.program_id(2) == 0)
    def _():
        acc_ref[...] = jnp.zeros_like(acc_ref)

    x = x_ref[...]
    if x.dtype != jnp.bfloat16:
        x = x.astype(jnp.bfloat16)
    acc_ref[...] += jnp.dot(x, w_ref[...], preferred_element_type=jnp.float32)

    @pl.when(pl.program_id(2) == pl.num_programs(2) - 1)
    def _():
        y = acc_ref[...] + b_ref[...]
        if activation == "relu":
            y = jnp.maximum(y, 0.0)
        o_ref[...] = y.astype(o_ref.dtype)


def linear(x, w_t, b, activation=None, out_dtype=jnp.float32):
    """y = x @ w_t + b  (w_t pre-transposed to (K, N), bf16); optional fused relu."""
    M0, K0 = x.shape
    Kw, N0 = w_t.shape
    assert K0 == Kw
    tm = _pick_tile(M0, TM_PREF, 8)
    tn = _pick_tile(N0, TN_PREF, 128)
    tk = _pick_tile(K0, TK_PREF, 128)
    # Padding fallback (rare: only when a large dim has no aligned divisor).
    if tm == 0:
        x = _pad_dim(x, 0, TM_PREF); tm = TM_PREF
    if tk == 0:
        x = _pad_dim(x, 1, TK_PREF); w_t = _pad_dim(w_t, 0, TK_PREF); tk = TK_PREF
    if tn == 0:
        w_t = _pad_dim(w_t, 1, TN_PREF); b = _pad_dim(b, 0, TN_PREF); tn = TN_PREF
    M, K = x.shape
    N = w_t.shape[1]

    out = pl.pallas_call(
        functools.partial(_linear_kernel, activation=activation),
        out_shape=jax.ShapeDtypeStruct((M, N), out_dtype),
        grid=(M // tm, N // tn, K // tk),
        in_specs=[
            pl.BlockSpec((tm, tk), lambda i, j, k: (i, k)),
            pl.BlockSpec((tk, tn), lambda i, j, k: (k, j)),
            pl.BlockSpec((1, tn), lambda i, j, k: (0, j)),
        ],
        out_specs=pl.BlockSpec((tm, tn), lambda i, j, k: (i, j)),
        scratch_shapes=[pltpu.VMEM((tm, tn), jnp.float32)],
        compiler_params=_cparams(("parallel", "parallel", "arbitrary")),
    )(x, w_t, b.reshape(1, N))

    if (M, N) != (M0, N0):
        out = out[:M0, :N0]
    return out


def _linear_res_ln_kernel(x_ref, w_ref, b_ref, r_ref, g_ref, beta_ref, o_ref,
                          acc_ref, *, eps):
    # Fused: LayerNorm(resid + (x @ w_t + b)) -- post-norm residual epilogue.
    @pl.when(pl.program_id(1) == 0)
    def _():
        acc_ref[...] = jnp.zeros_like(acc_ref)

    x = x_ref[...]
    if x.dtype != jnp.bfloat16:
        x = x.astype(jnp.bfloat16)
    acc_ref[...] += jnp.dot(x, w_ref[...], preferred_element_type=jnp.float32)

    @pl.when(pl.program_id(1) == pl.num_programs(1) - 1)
    def _():
        h = acc_ref[...] + b_ref[...] + r_ref[...]
        mu = jnp.mean(h, axis=-1, keepdims=True)
        var = jnp.mean(jnp.square(h - mu), axis=-1, keepdims=True)
        y = (h - mu) * jax.lax.rsqrt(var + eps) * g_ref[...] + beta_ref[...]
        o_ref[...] = y.astype(o_ref.dtype)


def linear_residual_layernorm(x, w_t, b, resid, gamma, beta, eps=1e-5):
    """LayerNorm(resid + x @ w_t + b), tiled over rows with a K accumulator."""
    M0, K0 = x.shape
    Kw, N = w_t.shape
    assert K0 == Kw and resid.shape == (M0, N)
    tm = _pick_tile(M0, TM_PREF, 8)
    tk = _pick_tile(K0, TK_PREF, 128)
    if tm == 0:
        x = _pad_dim(x, 0, TM_PREF); resid = _pad_dim(resid, 0, TM_PREF); tm = TM_PREF
    if tk == 0:
        x = _pad_dim(x, 1, TK_PREF); w_t = _pad_dim(w_t, 0, TK_PREF); tk = TK_PREF
    M, K = x.shape

    out = pl.pallas_call(
        functools.partial(_linear_res_ln_kernel, eps=eps),
        out_shape=jax.ShapeDtypeStruct((M, N), jnp.float32),
        grid=(M // tm, K // tk),
        in_specs=[
            pl.BlockSpec((tm, tk), lambda i, k: (i, k)),
            pl.BlockSpec((tk, N), lambda i, k: (k, 0)),
            pl.BlockSpec((1, N), lambda i, k: (0, 0)),
            pl.BlockSpec((tm, N), lambda i, k: (i, 0)),
            pl.BlockSpec((1, N), lambda i, k: (0, 0)),
            pl.BlockSpec((1, N), lambda i, k: (0, 0)),
        ],
        out_specs=pl.BlockSpec((tm, N), lambda i, k: (i, 0)),
        scratch_shapes=[pltpu.VMEM((tm, N), jnp.float32)],
        compiler_params=_cparams(("parallel", "arbitrary")),
    )(x, w_t, b.reshape(1, N), resid, gamma.reshape(1, N), beta.reshape(1, N))

    if M != M0:
        out = out[:M0]
    return out


def _attn_kernel(qkv_ref, mask_ref, o_ref, *, heads, d_head):
    # One (batch element, head group) per grid step.  QKV is packed head-major
    # ([h][q|k|v][Dh]), the 1/sqrt(Dh) scale is pre-folded into the q weights,
    # and every head writes its result straight into its lane slice of o_ref
    # (no concat, bounded live ranges).
    qkv = qkv_ref[0]          # (S, heads*3*Dh) bf16
    mask = mask_ref[...]      # (S, S) additive f32
    for h in range(heads):    # static unroll over heads in the group (small)
        base = h * 3 * d_head
        q = qkv[:, base:base + d_head]
        k = qkv[:, base + d_head:base + 2 * d_head]
        v = qkv[:, base + 2 * d_head:base + 3 * d_head]
        # q @ k^T without materializing a transpose (MXU consumes transposed RHS).
        s = jax.lax.dot_general(q, k, (((1,), (1,)), ((), ())),
                                preferred_element_type=jnp.float32)
        s = s + mask
        s = s - jnp.max(s, axis=-1, keepdims=True)
        p = jnp.exp(s)
        # approx reciprocal is EUP-cheap; set approx=False for strict parity.
        p = p * pl.reciprocal(jnp.sum(p, axis=-1, keepdims=True), approx=True)
        o_ref[0, :, h * d_head:(h + 1) * d_head] = jnp.dot(
            p.astype(jnp.bfloat16), v, preferred_element_type=jnp.float32
        ).astype(o_ref.dtype)


def _heads_per_group(nhead, d_head):
    # Smallest divisor of nhead whose group width is a 128 lane multiple; else
    # all heads (group width == d_model == full array dim, always legal).
    for hpg in range(1, nhead):
        if nhead % hpg == 0 and (hpg * d_head) % 128 == 0:
            return hpg
    return nhead


def multihead_attention(qkv, mask, *, batch, seq, nhead, d_head):
    """qkv: (B*S, 3*D) head-major packed projections (bf16); mask: (S, S) f32."""
    # TODO(synk): for long sequences convert to a flash-style online-softmax with
    # a (q_tile, kv_tile) grid + VMEM m/l/acc scratch, and generate the causal
    # mask in-kernel via broadcasted_iota instead of keeping an SxS array resident.
    d_model = nhead * d_head
    hpg = _heads_per_group(nhead, d_head)
    n_groups = nhead // hpg
    grp_in = 3 * hpg * d_head
    grp_out = hpg * d_head
    qkv3 = qkv.reshape(batch, seq, 3 * d_model)
    out = pl.pallas_call(
        functools.partial(_attn_kernel, heads=hpg, d_head=d_head),
        out_shape=jax.ShapeDtypeStruct((batch, seq, d_model), jnp.bfloat16),
        grid=(batch, n_groups),
        in_specs=[
            pl.BlockSpec((1, seq, grp_in), lambda b, g: (b, 0, g)),
            pl.BlockSpec((seq, seq), lambda b, g: (0, 0)),   # mask stays resident
        ],
        out_specs=pl.BlockSpec((1, seq, grp_out), lambda b, g: (b, 0, g)),
        compiler_params=_cparams(("parallel", "parallel")),
    )(qkv3, mask)
    return out.reshape(batch * seq, d_model)


# ----------------------------------------------------------------------------
# Parameter construction (deterministic, mirrors the PyTorch module's shapes)
# ----------------------------------------------------------------------------

def positional_encoding(max_len, d_model):
    position = jnp.arange(max_len, dtype=jnp.float32)[:, None]
    div_term = jnp.exp(
        jnp.arange(0, d_model, 2, dtype=jnp.float32) * (-math.log(10000.0) / d_model)
    )
    pe = jnp.zeros((max_len, d_model), dtype=jnp.float32)
    pe = pe.at[:, 0::2].set(jnp.sin(position * div_term))
    pe = pe.at[:, 1::2].set(jnp.cos(position * div_term))
    return pe  # (max_len, d_model); assumes even d_model


def _qkv_head_major_perm(d_model, nhead):
    # Column permutation: [q | k | v] (each head-major inside) -> [h][q|k|v][Dh].
    d_head = d_model // nhead
    perm = []
    for h in range(nhead):
        for kind in range(3):
            base = kind * d_model + h * d_head
            perm.extend(range(base, base + d_head))
    return jnp.asarray(perm, jnp.int32)


def init_params(key, ntoken, d_model, nhead, d_hid, nlayers, max_len=512):
    initrange = 0.1
    d_head = d_model // nhead
    keys = jax.random.split(key, 2 + nlayers)

    emb = jax.random.uniform(keys[0], (ntoken, d_model), jnp.float32,
                             -initrange, initrange)
    emb = emb.at[PAD_IDX].set(0.0)  # padding_idx row zeroed at init

    dec_w = jax.random.uniform(keys[1], (ntoken, d_model), jnp.float32,
                               -initrange, initrange)
    # Pre-pad the vocab axis to a 128-lane multiple: unmasked stores + tiled N,
    # sliced back to ntoken once at the very end.
    ntoken_pad = ((ntoken + 127) // 128) * 128
    dec_w_t = jnp.pad(dec_w.T, ((0, 0), (0, ntoken_pad - ntoken)))

    perm = _qkv_head_major_perm(d_model, nhead)
    scale = 1.0 / math.sqrt(d_head)

    layers = []
    for l in range(nlayers):
        lk = jax.random.split(keys[2 + l], 4)
        in_w = jax.random.uniform(lk[0], (3 * d_model, d_model), jnp.float32,
                                  -initrange, initrange)
        out_w = jax.random.uniform(lk[1], (d_model, d_model), jnp.float32,
                                   -initrange, initrange)
        l1_w = jax.random.uniform(lk[2], (d_hid, d_model), jnp.float32,
                                  -initrange, initrange)
        l2_w = jax.random.uniform(lk[3], (d_model, d_hid), jnp.float32,
                                  -initrange, initrange)
        # Fold 1/sqrt(Dh) into the q projection, then permute head-major.
        in_w_t = in_w.T
        in_w_t = in_w_t.at[:, :d_model].multiply(scale)
        in_b = jnp.zeros((3 * d_model,), jnp.float32)
        in_w_t = in_w_t[:, perm]
        in_b = in_b[perm]
        layers.append(dict(
            # Weights pre-transposed once to (K, N) and stored bf16 for the MXU.
            in_w_t=in_w_t.astype(jnp.bfloat16),
            in_b=in_b,
            out_w_t=out_w.T.astype(jnp.bfloat16),
            out_b=jnp.zeros((d_model,), jnp.float32),
            l1_w_t=l1_w.T.astype(jnp.bfloat16),
            l1_b=jnp.zeros((d_hid,), jnp.float32),
            l2_w_t=l2_w.T.astype(jnp.bfloat16),
            l2_b=jnp.zeros((d_model,), jnp.float32),
            n1_g=jnp.ones((d_model,), jnp.float32),
            n1_b=jnp.zeros((d_model,), jnp.float32),
            n2_g=jnp.ones((d_model,), jnp.float32),
            n2_b=jnp.zeros((d_model,), jnp.float32),
        ))

    return dict(
        ntoken=ntoken, ntoken_pad=ntoken_pad, d_model=d_model, nhead=nhead,
        emb=emb,
        dec_w_t=dec_w_t.astype(jnp.bfloat16),
        dec_b=jnp.zeros((ntoken_pad,), jnp.float32),
        pe=positional_encoding(max_len, d_model),
        layers=layers,
    )


# ----------------------------------------------------------------------------
# Forward pass (glue in plain JAX, hot paths in Pallas)
# ----------------------------------------------------------------------------

def transformer_forward(params, src, src_mask):
    # src: (S, B) int32 token ids; src_mask: (S, S) additive float mask.
    S, B = src.shape
    D = params["d_model"]
    H = params["nhead"]
    Dh = D // H

    # Embedding gather + scale + positional encoding (glue; dropout == identity).
    x = params["emb"][src.T] * math.sqrt(D)                 # (B, S, D) f32
    x = x + params["pe"][:S][None, :, :]
    x2d = x.reshape(B * S, D)

    for layer in params["layers"]:
        # --- self-attention block (post-norm); QKV/attn kept bf16 in HBM ---
        qkv = linear(x2d, layer["in_w_t"], layer["in_b"],
                     out_dtype=jnp.bfloat16)                              # (B*S, 3D)
        attn = multihead_attention(qkv, src_mask, batch=B, seq=S,
                                   nhead=H, d_head=Dh)                    # (B*S, D)
        x2d = linear_residual_layernorm(attn, layer["out_w_t"], layer["out_b"],
                                        x2d, layer["n1_g"], layer["n1_b"])

        # --- feed-forward block (post-norm); hidden kept bf16 in HBM ---
        ff = linear(x2d, layer["l1_w_t"], layer["l1_b"], activation="relu",
                    out_dtype=jnp.bfloat16)                               # (B*S, Dh_id)
        x2d = linear_residual_layernorm(ff, layer["l2_w_t"], layer["l2_b"],
                                        x2d, layer["n2_g"], layer["n2_b"])

    # Re-lay the small D-wide activations seq-major so the (S, B, ntoken) logits
    # come out of the decoder matmul already in the right order (no logits
    # transpose — that would be the largest HBM round trip in the model).
    x_sb = x2d.reshape(B, S, D).transpose(1, 0, 2).reshape(S * B, D)
    logits = linear(x_sb, params["dec_w_t"], params["dec_b"])   # (S*B, ntoken_pad)
    logits = logits.reshape(S, B, -1)
    if params["ntoken_pad"] != params["ntoken"]:
        logits = logits[:, :, :params["ntoken"]]
    return logits                                               # (S, B, ntoken)


# ----------------------------------------------------------------------------
# Main
# ----------------------------------------------------------------------------

if __name__ == "__main__":
    ntoken, d_model, nhead, d_hid, nlayers = 50, 32, 4, 64, 2
    S, B = 8, 2

    key = jax.random.PRNGKey(0)
    k_src, k_params = jax.random.split(key)

    params = init_params(k_params, ntoken, d_model, nhead, d_hid, nlayers)

    src = jax.random.randint(k_src, (S, B), 0, ntoken, dtype=jnp.int32)

    # Causal (subsequent-position) additive mask, as produced by
    # torch.nn.Transformer.generate_square_subsequent_mask.
    causal = jnp.triu(jnp.ones((S, S), jnp.float32), k=1) * (-1e9)

    # TODO(synk): src_key_padding_mask is None here; a non-None boolean padding
    # mask would be folded into the additive mask before the attention kernel.
    out = transformer_forward(params, src, causal)
    out = jax.block_until_ready(out)

    assert out.shape == (S, B, ntoken), out.shape
    assert jnp.all(jnp.isfinite(out))
    print("KERNEL_OK")
</pallas_src>

<mosaic_0001>
module attributes {stable_mosaic.version = 11 : i64} {
  func.func @_linear_kernel(%arg0: i32, %arg1: i32, %arg2: i32, %arg3: memref<16x32xf32, #tpu.memory_space<vmem>>, %arg4: memref<32x96xbf16, #tpu.memory_space<vmem>>, %arg5: memref<1x96xf32, #tpu.memory_space<vmem>>, %arg6: memref<16x96xbf16, #tpu.memory_space<vmem>>, %arg7: memref<16x96xf32, #tpu.memory_space<vmem>>) attributes {dimension_semantics = [#tpu.dimension_semantics<parallel>, #tpu.dimension_semantics<parallel>, #tpu.dimension_semantics<arbitrary>], iteration_bounds = array<i64: 1, 1, 1>, scalar_prefetch = 0 : i64, scratch_operands = 1 : i64, tpu.core_type = #tpu.core_type<tc>, window_params = [{transform_indices = @transform_0, window_bounds = array<i64: 16, 32>}, {transform_indices = @transform_1, window_bounds = array<i64: 32, 96>}, {transform_indices = @transform_2, window_bounds = array<i64: 1, 96>}, {transform_indices = @transform_3, window_bounds = array<i64: 16, 96>}]} {
    %c0_i32 = arith.constant 0 : i32
    %0 = arith.cmpi eq, %arg2, %c0_i32 : i32
    %1 = arith.extui %0 : i1 to i32
    %c0_i32_0 = arith.constant 0 : i32
    %2 = arith.cmpi ne, %1, %c0_i32_0 : i32
    scf.if %2 {
      %cst_10 = arith.constant 0.000000e+00 : f32
      %13 = vector.broadcast %cst_10 : f32 to vector<16x96xf32>
      %c0_11 = arith.constant 0 : index
      %c0_12 = arith.constant 0 : index
      %14 = vector.load %arg7[%c0_11, %c0_12] : memref<16x96xf32, #tpu.memory_space<vmem>>, vector<16x96xf32>
      tpu.vector_store %arg7[%c0_11, %c0_12], %13 {strides = array<i32>} : memref<16x96xf32, #tpu.memory_space<vmem>>, vector<16x96xf32>,
    } else {
    }
    %c0 = arith.constant 0 : index
    %c0_1 = arith.constant 0 : index
    %3 = vector.load %arg3[%c0, %c0_1] : memref<16x32xf32, #tpu.memory_space<vmem>>, vector<16x32xf32>
    %4 = arith.truncf %3 : vector<16x32xf32> to vector<16x32xbf16>
    %c0_2 = arith.constant 0 : index
    %c0_3 = arith.constant 0 : index
    %5 = vector.load %arg7[%c0_2, %c0_3] : memref<16x96xf32, #tpu.memory_space<vmem>>, vector<16x96xf32>
    %c0_4 = arith.constant 0 : index
    %c0_5 = arith.constant 0 : index
    %6 = vector.load %arg4[%c0_4, %c0_5] : memref<32x96xbf16, #tpu.memory_space<vmem>>, vector<32x96xbf16>
    %cst = arith.constant dense<0.000000e+00> : vector<16x96xf32>
    %7 = tpu.matmul %4, %6, %cst {dimension_numbers = #tpu.dot_dimension_numbers<[1], [0], [0], [1], [0, 0, 1, 1], [], []>} : vector<16x32xbf16>, vector<32x96xbf16>, vector<16x96xf32> -> vector<16x96xf32>
    %8 = arith.addf %5, %7 : vector<16x96xf32>
    %c0_6 = arith.constant 0 : index
    %c0_7 = arith.constant 0 : index
    %9 = vector.load %arg7[%c0_6, %c0_7] : memref<16x96xf32, #tpu.memory_space<vmem>>, vector<16x96xf32>
    tpu.vector_store %arg7[%c0_6, %c0_7], %8 {strides = array<i32>} : memref<16x96xf32, #tpu.memory_space<vmem>>, vector<16x96xf32>,
    %c0_i32_8 = arith.constant 0 : i32
    %10 = arith.cmpi eq, %arg2, %c0_i32_8 : i32
    %11 = arith.extui %10 : i1 to i32
    %c0_i32_9 = arith.constant 0 : i32
    %12 = arith.cmpi ne, %11, %c0_i32_9 : i32
    scf.if %12 {
      %c0_10 = arith.constant 0 : index
      %c0_11 = arith.constant 0 : index
      %13 = vector.load %arg7[%c0_10, %c0_11] : memref<16x96xf32, #tpu.memory_space<vmem>>, vector<16x96xf32>
      %c0_12 = arith.constant 0 : index
      %c0_13 = arith.constant 0 : index
      %14 = vector.load %arg5[%c0_12, %c0_13] : memref<1x96xf32, #tpu.memory_space<vmem>>, vector<1x96xf32>
      %15 = vector.broadcast %14 : vector<1x96xf32> to vector<16x96xf32>
      %16 = arith.addf %13, %15 : vector<16x96xf32>
      %17 = arith.truncf %16 : vector<16x96xf32> to vector<16x96xbf16>
      %c0_14 = arith.constant 0 : index
      %c0_15 = arith.constant 0 : index
      %18 = vector.load %arg6[%c0_14, %c0_15] : memref<16x96xbf16, #tpu.memory_space<vmem>>, vector<16x96xbf16>
      tpu.vector_store %arg6[%c0_14, %c0_15], %17 {strides = array<i32>} : memref<16x96xbf16, #tpu.memory_space<vmem>>, vector<16x96xbf16>,
    } else {
    }
    return
  }
  func.func @transform_0(%arg0: i32, %arg1: i32, %arg2: i32) -> (i32, i32) {
    %c0_i32 = arith.constant 0 : i32
    return %arg0, %arg2 : i32, i32
  }
  func.func @transform_1(%arg0: i32, %arg1: i32, %arg2: i32) -> (i32, i32) {
    %c0_i32 = arith.constant 0 : i32
    return %arg2, %arg1 : i32, i32
  }
  func.func @transform_2(%arg0: i32, %arg1: i32, %arg2: i32) -> (i32, i32) {
    %c0_i32 = arith.constant 0 : i32
    %c0_i32_0 = arith.constant 0 : i32
    return %c0_i32, %arg1 : i32, i32
  }
  func.func @transform_3(%arg0: i32, %arg1: i32, %arg2: i32) -> (i32, i32) {
    %c0_i32 = arith.constant 0 : i32
    return %arg0, %arg1 : i32, i32
  }
}

</mosaic_0001>

<llo_original>
// kernel: tpu_custom_call.1
$region0: #{tpu_custom_call.1}
  #allocation0 [shape = 'u32[]', space=smem, size = 0x4, offset = 0x4, fixed_abs, tag = 'smem constant byte address 0x4 - core index']
  #allocation1 [shape = 'u32[144,128]{1,0:T(1,128)}', space=vmem, size = 0x12000, scoped, tag = 'internal scratch']
  #allocation2 [shape = 'f32[16,96]{1,0:T(8,128)}', space=vmem, size = 0x2000, scoped, tag = 'scratch operand']
  %s0 = inlined_call_operand.hbm [shape: f32[16,32], index: 0, kind: input, shape index: {}]
  %s1 = inlined_call_operand.hbm [shape: bf16[32,96], index: 1, kind: input, shape index: {}]
  %s2 = inlined_call_operand.hbm [shape: f32[1,96], index: 2, kind: input, shape index: {}]
  %s3 = inlined_call_operand.hbm [shape: bf16[16,96], index: 3, kind: output, shape index: {}]
  %s4 = sld [smem:[#allocation0]]
  $region42: #{tpu_custom_call.1} parent=0
    _
  %s6 = ssub.s32 1, %s4
  %s7 = scalar_select 0, %s6, %s4
  $region1: #{tpu_custom_call.1} parent=0
    #allocation3 [shape = 'u8[8192]{0}', space=vmem, size = 0x2000, scoped, tag = 'input window, operand 0, single buffered']
    #allocation4 [shape = 's32[1]{0}', space=sflag, size = 0x4, scoped, tag = 'scoped memory for tpu_custom_call.1']
    #allocation5 [shape = 's32[1]{0}', space=sflag, size = 0x4, scoped, tag = 'scoped memory for tpu_custom_call.1']
    #allocation6 [shape = 'u8[8192]{0}', space=vmem, size = 0x2000, scoped, tag = 'input window, operand 1, single buffered']
    #allocation7 [shape = 's32[1]{0}', space=sflag, size = 0x4, scoped, tag = 'scoped memory for tpu_custom_call.1']
    #allocation8 [shape = 'u8[512]{0}', space=vmem, size = 0x400, scoped, tag = 'input window, operand 2, single buffered']
    #allocation9 [shape = 'u8[4096]{0}', space=vmem, size = 0x1000, scoped, tag = 'output window, operand 0, single buffered']
    %8 = vsyncpa [#allocation4], 0
    %9 = vsyncpa [#allocation7], 0
    %10 = vsyncpa [#allocation5], 0
    // Predicated region
    $region2: #{tpu_custom_call.1} parent=1 // pred_check
      _
    $region3: #{tpu_custom_call.1} parent=1 // pred_check_branch
      %12 = sbr.rel (0) target = $region5
    $region4: #{tpu_custom_call.1} parent=1 // pred_region
      %s14 = ssub.s32 256, 256
      %15 = vsyncadd [#allocation4], %s14
      %s16 = sshll.u32 [#allocation3], 4
      %s17 = int_to_ptr.vmem [resolvable:$true] %s16
      %22 = dma.hbm_to_vmem [thread:$0]  %s0, 256, %s17, [#allocation4], 128, 128, 8
    $region5: #{tpu_custom_call.1} parent=1 // pred_fallthru
      _
    // Predicated region
    $region6: #{tpu_custom_call.1} parent=1 // pred_check
      _
    $region7: #{tpu_custom_call.1} parent=1 // pred_check_branch
      %24 = sbr.rel (0) target = $region9
    $region8: #{tpu_custom_call.1} parent=1 // pred_region
      %s26 = ssub.s32 256, 256
      %27 = vsyncadd [#allocation7], %s26
      %s28 = sshll.u32 [#allocation6], 4
      %s29 = int_to_ptr.vmem [resolvable:$true] %s28
      %34 = dma.hbm_to_vmem [thread:$0]  %s1, 256, %s29, [#allocation7], 64, 64, 4
    $region9: #{tpu_custom_call.1} parent=1 // pred_fallthru
      _
    // Predicated region
    $region10: #{tpu_custom_call.1} parent=1 // pred_check
      _
    $region11: #{tpu_custom_call.1} parent=1 // pred_check_branch
      %36 = sbr.rel (0) target = $region13
    $region12: #{tpu_custom_call.1} parent=1 // pred_region
      %s38 = ssub.s32 16, 16
      %39 = vsyncadd [#allocation7], %s38
      %s41 = sshll.u32 [#allocation8], 4
      %s42 = int_to_ptr.vmem [resolvable:$true] %s41
      %44 = dma.hbm_to_vmem [thread:$0]  %s2, 16, %s42, [#allocation7]
    $region13: #{tpu_custom_call.1} parent=1 // pred_fallthru
      _
    // Predicated region
    $region14: #{tpu_custom_call.1} parent=1 // pred_check
      _
    $region15: #{tpu_custom_call.1} parent=1 // pred_check_branch
      %46 = sbr.rel (0) target = $region17
    $region16: #{tpu_custom_call.1} parent=1 // pred_region
      %47 = dma.done [#allocation4], 256
    $region17: #{tpu_custom_call.1} parent=1 // pred_fallthru
      _
    // Predicated region
    $region18: #{tpu_custom_call.1} parent=1 // pred_check
      _
    $region19: #{tpu_custom_call.1} parent=1 // pred_check_branch
      %49 = sbr.rel (0) target = $region21
    $region20: #{tpu_custom_call.1} parent=1 // pred_region
      %50 = dma.done [#allocation7], 256
    $region21: #{tpu_custom_call.1} parent=1 // pred_fallthru
      _
    // Predicated region
    $region22: #{tpu_custom_call.1} parent=1 // pred_check
      _
    $region23: #{tpu_custom_call.1} parent=1 // pred_check_branch
      %52 = sbr.rel (0) target = $region25
    $region24: #{tpu_custom_call.1} parent=1 // pred_region
      %53 = dma.done [#allocation7], 16
    $region25: #{tpu_custom_call.1} parent=1 // pred_fallthru
      _
    %p55 = scmp.eq.s32.totalorder 0, 0
    // Predicated region
    $region26: #{tpu_custom_call.1} parent=1 // pred_check
      %p56 = pneg %p55
    $region27: #{tpu_custom_call.1} parent=1 // pred_check_branch
      %58 = sbr.rel (%p56) target = $region29
    $region28: #{tpu_custom_call.1} parent=1 // pred_region
      %vm59 = vcmask 785408
      %60 = vst.msk [vmem:[#allocation2] sm:$0xff] %vm59, 0.0
      %61 = vst.msk [vmem:[#allocation2 + $0x8] sm:$0xff] %vm59, 0.0
    $region29: #{tpu_custom_call.1} parent=1 // pred_fallthru
      _
    %v62 = vld [vmem:[#allocation3] sm:$0xff]
    %v63 = vld [vmem:[#allocation3 + $0x8] sm:$0xff]
    %v64 = vpack.c.bf16 %v63, %v62
    %v65 = vld [vmem:[#allocation2] sm:$0xff]
    %v66 = vld [vmem:[#allocation2 + $0x8] sm:$0xff]
    %v67 = vld [vmem:[#allocation6] sm:$0xf]
    %v68 = vld [vmem:[#allocation6 + $0x4] sm:$0xf]
    %v69 = vld [vmem:[#allocation6 + $0x8] sm:$0xf]
    %v70 = vld [vmem:[#allocation6 + $0xc] sm:$0xf]
    %v75 = vunpack.c.l.b16 %v67
    %v76 = vunpack.c.l.b16 %v68
    %v77 = vunpack.c.l.b16 %v69
    %v78 = vunpack.c.l.b16 %v70
    %v79 = vpack.c.b16 %v76, %v75
    %v80 = vpack.c.b16 %v78, %v77
    %vm83 = vcmask 261120
    %v85 = vsel %vm83, %v64, 0
    %87 = vmatprep.subr.bf16.mxu0 0
    %88 = vmatpush1.bf16.msra.mxu0 %v79
    %89 = vmatprep.subr.bf16.mxu0 0
    %90 = vmatpush1.bf16.msra.mxu0 %v80
    %91 = vmatprep.subr.bf16.mxu0 0
    %92 = vmatpush1.bf16.msra.mxu0 0
    %93 = vmatprep.subr.bf16.mxu0 0
    %94 = vmatpush1.bf16.msra.mxu0 0
    %95 = vmatprep.subr.bf16.mxu0 0
    %96 = vmatpush1.bf16.msra.mxu0 0
    %97 = vmatprep.subr.bf16.mxu0 0
    %98 = vmatpush1.bf16.msra.mxu0 0
    %99 = vmatprep.subr.bf16.mxu0 0
    %100 = vmatpush1.bf16.msra.mxu0 0
    %101 = vmatprep.subr.bf16.mxu0 0
    %102 = vmatpush1.bf16.msra.mxu0 0
    %103 = vmatprep.subr.bf16.mxu0 0
    %104 = vmatpush1.bf16.msra.mxu0 0
    %105 = vmatprep.subr.bf16.mxu0 0
    %106 = vmatpush1.bf16.msra.mxu0 0
    %107 = vmatprep.subr.bf16.mxu0 0
    %108 = vmatpush1.bf16.msra.mxu0 0
    %109 = vmatprep.subr.bf16.mxu0 0
    %110 = vmatpush1.bf16.msra.mxu0 0
    %111 = vmatprep.subr.bf16.mxu0 0
    %112 = vmatpush1.bf16.msra.mxu0 0
    %113 = vmatprep.subr.bf16.mxu0 0
    %114 = vmatpush1.bf16.msra.mxu0 0
    %115 = vmatprep.subr.bf16.mxu0 0
    %116 = vmatpush1.bf16.msra.mxu0 0
    %117 = vmatprep.subr.bf16.mxu0 0
    %118 = vmatpush1.bf16.msra.mxu0 0
    %119 = vmatprep.mubr.bf16.mxu0 0
    %120 = vmatmul.mubr.bf16.gmra.mrb[0].mxu0 %v85
    %v121 = vpop.f32.mrb[0].mxu0
    %v122 = vadd.f32 0.0, %v121
    %v123 = vpop.f32.mrb[0].mxu0
    %v124 = vpop.f32.mrb[0].mxu0
    %v125 = vadd.f32 0.0, %v124
    %v126 = vpop.f32.mrb[0].mxu0
    %127 = vdwg.mxu0
    %v128 = vadd.f32 %v65, %v122
    %v129 = vadd.f32 %v66, %v125
    %vm130 = vcmask 785408
    %131 = vst.msk [vmem:[#allocation2] sm:$0xff] %vm130, %v128
    %132 = vst.msk [vmem:[#allocation2 + $0x8] sm:$0xff] %vm130, %v129
    // Predicated region
    $region30: #{tpu_custom_call.1} parent=1 // pred_check
      %p133 = pneg %p55
    $region31: #{tpu_custom_call.1} parent=1 // pred_check_branch
      %135 = sbr.rel (%p133) target = $region33
    $region32: #{tpu_custom_call.1} parent=1 // pred_region
      %v136 = vld [vmem:[#allocation2] sm:$0xff]
      %v137 = vld [vmem:[#allocation2 + $0x8] sm:$0xff]
      %v138 = vld [vmem:[#allocation8] sm:$0x1]
      %v140 = vlaneseq
      %v141 = vshrl.u32 %v140, 7
      %v142 = vsub.s32 0, %v141
      %v143 = vrot.slane %v138, %v142
      %v145 = vadd.f32 %v136, %v143
      %v146 = vadd.f32 %v137, %v143
      %v147 = vpack.c.bf16 %v146, %v145
      %v149 = vunpack.c.l.b16 %v147
      %v150 = vunpack.c.h.b16 %v147
      %v151 = vpack.c.b16 %v149, %v149
      %v152 = vpack.c.b16 %v150, %v150
      %vm155 = vcmask 781312
      %156 = vst.msk [vmem:[#allocation9] sm:$0xf] %vm155, %v151
      %157 = vst.msk [vmem:[#allocation9 + $0x4] sm:$0xf] %vm155, %v152
    $region33: #{tpu_custom_call.1} parent=1 // pred_fallthru
      _
    // Predicated region
    $region34: #{tpu_custom_call.1} parent=1 // pred_check
      _
    $region35: #{tpu_custom_call.1} parent=1 // pred_check_branch
      %159 = sbr.rel (0) target = $region37
    $region36: #{tpu_custom_call.1} parent=1 // pred_region
      %s161 = ssub.s32 128, 128
      %162 = vsyncadd [#allocation5], %s161
      %s163 = sshll.u32 [#allocation9], 4
      %s164 = int_to_ptr.vmem [resolvable:$true] %s163
      %169 = dma.vmem_to_hbm [thread:$0]  %s164, 128, %s3, [#allocation5], 64, 64, 4
    $region37: #{tpu_custom_call.1} parent=1 // pred_fallthru
      _
    // Predicated region
    $region38: #{tpu_custom_call.1} parent=1 // pred_check
      _
    $region39: #{tpu_custom_call.1} parent=1 // pred_check_branch
      %171 = sbr.rel (0) target = $region41
    $region40: #{tpu_custom_call.1} parent=1 // pred_region
      %172 = dma.done [#allocation5], 128
    $region41: #{tpu_custom_call.1} parent=1 // pred_fallthru
      _
    %173 = vsyncpa [#allocation4], 1
    %174 = vsyncpa [#allocation7], 1
    %175 = vsyncpa [#allocation5], 1

</llo_original>
